<compile_context>
chip_gen: v7x
topology: tpu7x:2x2x1
jax: 0.10.0
libtpu: 0.0.40
codegen_flags: <defaults>
</compile_context>

<pallas_src>
import numpy as np
import jax
import jax.numpy as jnp
from jax.experimental import pallas as pl
from jax.experimental.pallas import tpu as pltpu

LN_EPS = 1e-5  # PyTorch nn.LayerNorm default

# (name, d_in, d_hidden==d_out) for each observation branch.
BRANCH_DIMS = (
    ("position",        4, 8),
    ("dist_to_target",  1, 2),
    ("touch",           2, 4),
    ("target_position", 2, 4),
    ("velocity",        3, 6),
)
D_HID = sum(b[2] for b in BRANCH_DIMS)   # 24 (hidden == output width)

# Parameter-slab row layout (every section start is 8-sublane aligned).
W1_ROW_OFF = (0, 8, 16, 24, 32)   # per-branch first-layer weights, d_in rows used
W2D_ROW_OFF = 40                  # W2 @ (I - M)              (24 rows)
M_ROW_OFF = 64                    # per-branch block averaging (24 rows)
PB_ROW_OFF = 88                   # [b1, b2d, gamma, beta]     (4 rows)
SLAB_ROWS = 96


def finger_turn_hard_kernel(pos_ref, dist_ref, touch_ref, targ_ref, vel_ref,
                            slab_ref, out_ref):
    obs_refs = (pos_ref, dist_ref, touch_ref, targ_ref, vel_ref)

    # First layer for all 5 branches, accumulated on shared 24 output lanes.
    # Each branch weight is stored dense (d_in, 24), nonzero only in its block,
    # so the contributions simply sum (equivalent to the block-diagonal matmul).
    h = None
    for ref, (_, d_in, _), row in zip(obs_refs, BRANCH_DIMS, W1_ROW_OFF):
        w = slab_ref[row:row + d_in, :]                         # (d_in, 24)
        if d_in == 1:
            contrib = ref[...] * w                              # (B,1)*(1,24) VPU
        else:
            contrib = jnp.dot(ref[...], w,
                              preferred_element_type=jnp.float32)
        h = contrib if h is None else h + contrib

    pb = slab_ref[PB_ROW_OFF:PB_ROW_OFF + 4, :]                 # (4, 24)
    b1, b2d, gamma, beta = pb[0:1], pb[1:2], pb[2:3], pb[3:4]

    h = jnp.maximum(h + b1, 0.0)

    # Mean subtraction is folded into W2d = W2 @ (I - M) at pack time, so `d`
    # is already (y - mean(y)) per branch.
    d = jnp.dot(h, slab_ref[W2D_ROW_OFF:W2D_ROW_OFF + D_HID, :],
                preferred_element_type=jnp.float32) + b2d
    var = jnp.dot(d * d, slab_ref[M_ROW_OFF:M_ROW_OFF + D_HID, :],
                  preferred_element_type=jnp.float32)
    out_ref[...] = d * jax.lax.rsqrt(var + LN_EPS) * gamma + beta


def init_branch_params(key, d_in, d_hidden):
    """Deterministic synthetic params; Linear weights stored as (in, out) = W.T."""
    k1, k2, k3, k4 = jax.random.split(key, 4)
    w1 = jax.random.normal(k1, (d_in, d_hidden), jnp.float32) * 0.3
    b1 = jax.random.normal(k2, (1, d_hidden), jnp.float32) * 0.1
    w2 = jax.random.normal(k3, (d_hidden, d_hidden), jnp.float32) * 0.3
    b2 = jax.random.normal(k4, (1, d_hidden), jnp.float32) * 0.1
    gamma = jnp.ones((1, d_hidden), jnp.float32)
    beta = jnp.zeros((1, d_hidden), jnp.float32)
    return (w1, b1, w2, b2, gamma, beta)


def pack_params(params):
    """Pack all branch params into a single (96, 24) f32 slab (done once)."""
    slab = np.zeros((SLAB_ROWS, D_HID), np.float32)
    w2_blocks, m_blocks = [], []
    b1s, b2s, gs, betas = [], [], [], []
    col = 0
    for (name, d_in, d_h), row in zip(BRANCH_DIMS, W1_ROW_OFF):
        w1, b1, w2, b2, g, beta = (np.asarray(p, np.float32) for p in params[name])
        slab[row:row + d_in, col:col + d_h] = w1     # dense, zero outside block
        w2_blocks.append(w2)
        m_blocks.append(np.full((d_h, d_h), 1.0 / d_h, np.float32))
        b1s.append(b1); b2s.append(b2); gs.append(g); betas.append(beta)
        col += d_h

    def blk_diag(blocks):
        out = np.zeros((D_HID, D_HID), np.float32)
        off = 0
        for b in blocks:
            out[off:off + b.shape[0], off:off + b.shape[1]] = b
            off += b.shape[0]
        return out

    w2_full = blk_diag(w2_blocks)
    m_full = blk_diag(m_blocks)
    i_minus_m = np.eye(D_HID, dtype=np.float32) - m_full

    slab[W2D_ROW_OFF:W2D_ROW_OFF + D_HID] = w2_full @ i_minus_m   # mean folded in
    slab[M_ROW_OFF:M_ROW_OFF + D_HID] = m_full
    slab[PB_ROW_OFF + 0] = np.concatenate(b1s, -1)[0]
    slab[PB_ROW_OFF + 1] = (np.concatenate(b2s, -1) @ i_minus_m)[0]
    slab[PB_ROW_OFF + 2] = np.concatenate(gs, -1)[0]
    slab[PB_ROW_OFF + 3] = np.concatenate(betas, -1)[0]
    return jnp.asarray(slab)


@jax.jit
def finger_turn_hard_forward(x, slab):
    """x: dict of observations; slab: output of pack_params (single operand)."""
    dist = x["dist_to_target"]
    if dist.ndim == 1:                 # static-rank branch; mirrors unsqueeze(-1)
        dist = dist[:, None]
    B = dist.shape[0]

    vmem = pl.BlockSpec(memory_space=pltpu.MemorySpace.VMEM)
    return pl.pallas_call(
        finger_turn_hard_kernel,
        out_shape=jax.ShapeDtypeStruct((B, D_HID), jnp.float32),
        in_specs=[vmem] * 6,           # 5 observations + 1 param slab, all VMEM
        out_specs=vmem,
        # No grid: B=8 is a single tile; total VMEM footprint < 100 KiB, so no
        # vmem_limit / tiling / multi-core split is warranted at this size.
    )(x["position"], dist, x["touch"], x["target_position"], x["velocity"], slab)


if __name__ == "__main__":
    B = 8

    # Deterministic synthetic parameters.
    pkey = jax.random.PRNGKey(42)
    kp, kd, kt, kg, kv = jax.random.split(pkey, 5)
    params = {
        "position":        init_branch_params(kp, 4, 8),
        "dist_to_target":  init_branch_params(kd, 1, 2),
        "touch":           init_branch_params(kt, 2, 4),
        "target_position": init_branch_params(kg, 2, 4),
        "velocity":        init_branch_params(kv, 3, 6),
    }
    slab = pack_params(params)         # packed once, outside the jit

    # Deterministic example inputs.
    ikey = jax.random.PRNGKey(0)
    i1, i2, i3, i4, i5 = jax.random.split(ikey, 5)
    x = {
        "position":        jax.random.normal(i1, (B, 4), jnp.float32),
        "dist_to_target":  jax.random.normal(i2, (B,), jnp.float32),  # 1-D path
        "touch":           jax.random.normal(i3, (B, 2), jnp.float32),
        "target_position": jax.random.normal(i4, (B, 2), jnp.float32),
        "velocity":        jax.random.normal(i5, (B, 3), jnp.float32),
    }

    out = finger_turn_hard_forward(x, slab)
    jax.block_until_ready(out)

    # Pure-JAX per-branch reference (unpacked params, un-folded formulation).
    def ref_branch(xb, p):
        w1, b1, w2, b2, g, beta = p
        h = jnp.maximum(xb @ w1 + b1, 0.0)
        y = h @ w2 + b2
        mu = jnp.mean(y, axis=-1, keepdims=True)
        var = jnp.mean((y - mu) ** 2, axis=-1, keepdims=True)
        return (y - mu) * jax.lax.rsqrt(var + LN_EPS) * g + beta

    ref = jnp.concatenate([
        ref_branch(x["position"], params["position"]),
        ref_branch(x["dist_to_target"][:, None], params["dist_to_target"]),
        ref_branch(x["touch"], params["touch"]),
        ref_branch(x["target_position"], params["target_position"]),
        ref_branch(x["velocity"], params["velocity"]),
    ], axis=-1)

    assert out.shape == (B, 24)
    assert jnp.allclose(out, ref, atol=1e-4, rtol=1e-4)
    print("KERNEL_OK")
</pallas_src>

<mosaic_0001>
module attributes {stable_mosaic.version = 11 : i64} {
  func.func @finger_turn_hard_kernel(%arg0: memref<8x4xf32, #tpu.memory_space<vmem>>, %arg1: memref<8x1xf32, #tpu.memory_space<vmem>>, %arg2: memref<8x2xf32, #tpu.memory_space<vmem>>, %arg3: memref<8x2xf32, #tpu.memory_space<vmem>>, %arg4: memref<8x3xf32, #tpu.memory_space<vmem>>, %arg5: memref<96x24xf32, #tpu.memory_space<vmem>>, %arg6: memref<8x24xf32, #tpu.memory_space<vmem>>) attributes {dimension_semantics = [], scalar_prefetch = 0 : i64, scratch_operands = 0 : i64, tpu.core_type = #tpu.core_type<tc>} {
    %c0 = arith.constant 0 : index
    %c0_0 = arith.constant 0 : index
    %0 = vector.load %arg5[%c0, %c0_0] : memref<96x24xf32, #tpu.memory_space<vmem>>, vector<4x24xf32>
    %c0_1 = arith.constant 0 : index
    %c0_2 = arith.constant 0 : index
    %1 = vector.load %arg0[%c0_1, %c0_2] : memref<8x4xf32, #tpu.memory_space<vmem>>, vector<8x4xf32>
    %cst = arith.constant dense<0.000000e+00> : vector<8x24xf32>
    %2 = tpu.matmul %1, %0, %cst {dimension_numbers = #tpu.dot_dimension_numbers<[1], [0], [0], [1], [0, 0, 1, 1], [], []>} : vector<8x4xf32>, vector<4x24xf32>, vector<8x24xf32> -> vector<8x24xf32>
    %c8 = arith.constant 8 : index
    %c0_3 = arith.constant 0 : index
    %3 = vector.load %arg5[%c8, %c0_3] : memref<96x24xf32, #tpu.memory_space<vmem>>, vector<1x24xf32>
    %c0_4 = arith.constant 0 : index
    %c0_5 = arith.constant 0 : index
    %4 = vector.load %arg1[%c0_4, %c0_5] : memref<8x1xf32, #tpu.memory_space<vmem>>, vector<8x1xf32>
    %5 = vector.broadcast %4 : vector<8x1xf32> to vector<8x24xf32>
    %6 = vector.broadcast %3 : vector<1x24xf32> to vector<8x24xf32>
    %7 = arith.mulf %5, %6 : vector<8x24xf32>
    %8 = arith.addf %2, %7 : vector<8x24xf32>
    %c16 = arith.constant 16 : index
    %c0_6 = arith.constant 0 : index
    %9 = vector.load %arg5[%c16, %c0_6] : memref<96x24xf32, #tpu.memory_space<vmem>>, vector<2x24xf32>
    %c0_7 = arith.constant 0 : index
    %c0_8 = arith.constant 0 : index
    %10 = vector.load %arg2[%c0_7, %c0_8] : memref<8x2xf32, #tpu.memory_space<vmem>>, vector<8x2xf32>
    %cst_9 = arith.constant dense<0.000000e+00> : vector<8x24xf32>
    %11 = tpu.matmul %10, %9, %cst_9 {dimension_numbers = #tpu.dot_dimension_numbers<[1], [0], [0], [1], [0, 0, 1, 1], [], []>} : vector<8x2xf32>, vector<2x24xf32>, vector<8x24xf32> -> vector<8x24xf32>
    %12 = arith.addf %8, %11 : vector<8x24xf32>
    %c24 = arith.constant 24 : index
    %c0_10 = arith.constant 0 : index
    %13 = vector.load %arg5[%c24, %c0_10] : memref<96x24xf32, #tpu.memory_space<vmem>>, vector<2x24xf32>
    %c0_11 = arith.constant 0 : index
    %c0_12 = arith.constant 0 : index
    %14 = vector.load %arg3[%c0_11, %c0_12] : memref<8x2xf32, #tpu.memory_space<vmem>>, vector<8x2xf32>
    %cst_13 = arith.constant dense<0.000000e+00> : vector<8x24xf32>
    %15 = tpu.matmul %14, %13, %cst_13 {dimension_numbers = #tpu.dot_dimension_numbers<[1], [0], [0], [1], [0, 0, 1, 1], [], []>} : vector<8x2xf32>, vector<2x24xf32>, vector<8x24xf32> -> vector<8x24xf32>
    %16 = arith.addf %12, %15 : vector<8x24xf32>
    %c32 = arith.constant 32 : index
    %c0_14 = arith.constant 0 : index
    %17 = vector.load %arg5[%c32, %c0_14] : memref<96x24xf32, #tpu.memory_space<vmem>>, vector<3x24xf32>
    %c0_15 = arith.constant 0 : index
    %c0_16 = arith.constant 0 : index
    %18 = vector.load %arg4[%c0_15, %c0_16] : memref<8x3xf32, #tpu.memory_space<vmem>>, vector<8x3xf32>
    %cst_17 = arith.constant dense<0.000000e+00> : vector<8x24xf32>
    %19 = tpu.matmul %18, %17, %cst_17 {dimension_numbers = #tpu.dot_dimension_numbers<[1], [0], [0], [1], [0, 0, 1, 1], [], []>} : vector<8x3xf32>, vector<3x24xf32>, vector<8x24xf32> -> vector<8x24xf32>
    %20 = arith.addf %16, %19 : vector<8x24xf32>
    %c88 = arith.constant 88 : index
    %c0_18 = arith.constant 0 : index
    %21 = vector.load %arg5[%c88, %c0_18] : memref<96x24xf32, #tpu.memory_space<vmem>>, vector<4x24xf32>
    %22 = vector.extract_strided_slice %21 {offsets = [0, 0], sizes = [1, 24], strides = [1, 1]} : vector<4x24xf32> to vector<1x24xf32>
    %23 = vector.extract_strided_slice %21 {offsets = [1, 0], sizes = [1, 24], strides = [1, 1]} : vector<4x24xf32> to vector<1x24xf32>
    %24 = vector.extract_strided_slice %21 {offsets = [2, 0], sizes = [1, 24], strides = [1, 1]} : vector<4x24xf32> to vector<1x24xf32>
    %25 = vector.extract_strided_slice %21 {offsets = [3, 0], sizes = [1, 24], strides = [1, 1]} : vector<4x24xf32> to vector<1x24xf32>
    %26 = vector.broadcast %22 : vector<1x24xf32> to vector<8x24xf32>
    %27 = arith.addf %20, %26 : vector<8x24xf32>
    %cst_19 = arith.constant 0.000000e+00 : f32
    %28 = vector.broadcast %cst_19 : f32 to vector<8x24xf32>
    %29 = arith.maximumf %27, %28 : vector<8x24xf32>
    %c40 = arith.constant 40 : index
    %c0_20 = arith.constant 0 : index
    %30 = vector.load %arg5[%c40, %c0_20] : memref<96x24xf32, #tpu.memory_space<vmem>>, vector<24x24xf32>
    %cst_21 = arith.constant dense<0.000000e+00> : vector<8x24xf32>
    %31 = tpu.matmul %29, %30, %cst_21 {dimension_numbers = #tpu.dot_dimension_numbers<[1], [0], [0], [1], [0, 0, 1, 1], [], []>} : vector<8x24xf32>, vector<24x24xf32>, vector<8x24xf32> -> vector<8x24xf32>
    %32 = vector.broadcast %23 : vector<1x24xf32> to vector<8x24xf32>
    %33 = arith.addf %31, %32 : vector<8x24xf32>
    %34 = arith.mulf %33, %33 : vector<8x24xf32>
    %c64 = arith.constant 64 : index
    %c0_22 = arith.constant 0 : index
    %35 = vector.load %arg5[%c64, %c0_22] : memref<96x24xf32, #tpu.memory_space<vmem>>, vector<24x24xf32>
    %cst_23 = arith.constant dense<0.000000e+00> : vector<8x24xf32>
    %36 = tpu.matmul %34, %35, %cst_23 {dimension_numbers = #tpu.dot_dimension_numbers<[1], [0], [0], [1], [0, 0, 1, 1], [], []>} : vector<8x24xf32>, vector<24x24xf32>, vector<8x24xf32> -> vector<8x24xf32>
    %cst_24 = arith.constant 9.99999974E-6 : f32
    %37 = vector.broadcast %cst_24 : f32 to vector<8x24xf32>
    %38 = arith.addf %36, %37 : vector<8x24xf32>
    %39 = math.rsqrt %38 : vector<8x24xf32>
    %40 = arith.mulf %33, %39 : vector<8x24xf32>
    %41 = vector.broadcast %24 : vector<1x24xf32> to vector<8x24xf32>
    %42 = arith.mulf %40, %41 : vector<8x24xf32>
    %43 = vector.broadcast %25 : vector<1x24xf32> to vector<8x24xf32>
    %44 = arith.addf %42, %43 : vector<8x24xf32>
    %c0_25 = arith.constant 0 : index
    %c0_26 = arith.constant 0 : index
    %45 = vector.load %arg6[%c0_25, %c0_26] : memref<8x24xf32, #tpu.memory_space<vmem>>, vector<8x24xf32>
    tpu.vector_store %arg6[%c0_25, %c0_26], %44 {strides = array<i32>} : memref<8x24xf32, #tpu.memory_space<vmem>>, vector<8x24xf32>,
    return
  }
}

</mosaic_0001>

<llo_original>
// kernel: finger_turn_hard_forward.1
$region0: #{finger_turn_hard_forward.1}
  #allocation0 [shape = 'u32[]', space=smem, size = 0x4, offset = 0x4, fixed_abs, tag = 'smem constant byte address 0x4 - core index']
  #allocation1 [shape = 'u32[144,128]{1,0:T(1,128)}', space=vmem, size = 0x12000, scoped, tag = 'internal scratch']
  %s0 = inlined_call_operand.vmem [shape: f32[8,4], index: 0, kind: input, shape index: {}]
  %s1 = inlined_call_operand.vmem [shape: f32[8,1], index: 1, kind: input, shape index: {}]
  %s2 = inlined_call_operand.vmem [shape: f32[8,2], index: 2, kind: input, shape index: {}]
  %s3 = inlined_call_operand.vmem [shape: f32[8,2], index: 3, kind: input, shape index: {}]
  %s4 = inlined_call_operand.vmem [shape: f32[8,3], index: 4, kind: input, shape index: {}]
  %s5 = inlined_call_operand.vmem [shape: f32[96,24], index: 5, kind: input, shape index: {}]
  %s6 = inlined_call_operand.hbm [shape: f32[8,24], index: 6, kind: output, shape index: {}]
  %s7 = sld [smem:[#allocation0]]
  $region34: #{finger_turn_hard_forward.1} parent=0
    _
  %s9 = ssub.s32 1, %s7
  %s10 = scalar_select 0, %s9, %s7
  $region1: #{finger_turn_hard_forward.1} parent=0
    #allocation2 [shape = 'u8[4096]{0}', space=vmem, size = 0x1000, scoped, tag = 'output window, operand 0, single buffered']
    #allocation3 [shape = 's32[1]{0}', space=sflag, size = 0x4, scoped, tag = 'scoped memory for finger_turn_hard_forward.1']
    %11 = vsyncpa [#allocation3], 0
    // Predicated region
    $region2: #{finger_turn_hard_forward.1} parent=1 // pred_check
      _
    $region3: #{finger_turn_hard_forward.1} parent=1 // pred_check_branch
      %13 = sbr.rel (0) target = $region5
    $region4: #{finger_turn_hard_forward.1} parent=1 // pred_region
      _
    $region5: #{finger_turn_hard_forward.1} parent=1 // pred_fallthru
      _
    // Predicated region
    $region6: #{finger_turn_hard_forward.1} parent=1 // pred_check
      _
    $region7: #{finger_turn_hard_forward.1} parent=1 // pred_check_branch
      %15 = sbr.rel (0) target = $region9
    $region8: #{finger_turn_hard_forward.1} parent=1 // pred_region
      _
    $region9: #{finger_turn_hard_forward.1} parent=1 // pred_fallthru
      _
    // Predicated region
    $region10: #{finger_turn_hard_forward.1} parent=1 // pred_check
      _
    $region11: #{finger_turn_hard_forward.1} parent=1 // pred_check_branch
      %17 = sbr.rel (0) target = $region13
    $region12: #{finger_turn_hard_forward.1} parent=1 // pred_region
      _
    $region13: #{finger_turn_hard_forward.1} parent=1 // pred_fallthru
      _
    // Predicated region
    $region14: #{finger_turn_hard_forward.1} parent=1 // pred_check
      _
    $region15: #{finger_turn_hard_forward.1} parent=1 // pred_check_branch
      %19 = sbr.rel (0) target = $region17
    $region16: #{finger_turn_hard_forward.1} parent=1 // pred_region
      _
    $region17: #{finger_turn_hard_forward.1} parent=1 // pred_fallthru
      _
    // Predicated region
    $region18: #{finger_turn_hard_forward.1} parent=1 // pred_check
      _
    $region19: #{finger_turn_hard_forward.1} parent=1 // pred_check_branch
      %21 = sbr.rel (0) target = $region21
    $region20: #{finger_turn_hard_forward.1} parent=1 // pred_region
      _
    $region21: #{finger_turn_hard_forward.1} parent=1 // pred_fallthru
      _
    // Predicated region
    $region22: #{finger_turn_hard_forward.1} parent=1 // pred_check
      _
    $region23: #{finger_turn_hard_forward.1} parent=1 // pred_check_branch
      %23 = sbr.rel (0) target = $region25
    $region24: #{finger_turn_hard_forward.1} parent=1 // pred_region
      _
    $region25: #{finger_turn_hard_forward.1} parent=1 // pred_fallthru
      _
    %v24 = vld [vmem:[%s5] sm:$0xf]
    %v25 = vld [vmem:[%s0] sm:$0xff]
    %v26 = vld [vmem:[%s5 + $0x8] sm:$0x1]
    %v27 = vld [vmem:[%s1] sm:$0xff]
    %29 = vset.pattern.permute.xlu0 0
    %30 = vperm.xlu0 %29, %v27
    %v31 = vpop.permute.xlu0 %30
    %v33 = vlaneseq
    %v34 = vshrl.u32 %v33, 7
    %v35 = vsub.s32 0, %v34
    %v36 = vrot.slane %v26, %v35
    %v37 = vmul.f32 %v31, %v36
    %vm38 = vcmask 31744
    %v40 = vsel %vm38, %v25, 0
    %vm42 = vcmask 1043456
    %v44 = vsel %vm42, %v24, 0
    %46 = vmatprep.subr.mxu0 0.0
    %47 = vmatpush1.msra.mxu0 %v44
    %48 = vmatprep.subr.mxu0 0.0
    %49 = vmatpush1.msra.mxu0 0.0
    %50 = vmatprep.subr.mxu0 0.0
    %51 = vmatpush1.msra.mxu0 0.0
    %52 = vmatprep.subr.mxu0 0.0
    %53 = vmatpush1.msra.mxu0 0.0
    %54 = vmatprep.subr.mxu0 0.0
    %55 = vmatpush1.msra.mxu0 0.0
    %56 = vmatprep.subr.mxu0 0.0
    %57 = vmatpush1.msra.mxu0 0.0
    %58 = vmatprep.subr.mxu0 0.0
    %59 = vmatpush1.msra.mxu0 0.0
    %60 = vmatprep.subr.mxu0 0.0
    %61 = vmatpush1.msra.mxu0 0.0
    %62 = vmatprep.subr.mxu0 0.0
    %63 = vmatpush1.msra.mxu0 0.0
    %64 = vmatprep.subr.mxu0 0.0
    %65 = vmatpush1.msra.mxu0 0.0
    %66 = vmatprep.subr.mxu0 0.0
    %67 = vmatpush1.msra.mxu0 0.0
    %68 = vmatprep.subr.mxu0 0.0
    %69 = vmatpush1.msra.mxu0 0.0
    %70 = vmatprep.subr.mxu0 0.0
    %71 = vmatpush1.msra.mxu0 0.0
    %72 = vmatprep.subr.mxu0 0.0
    %73 = vmatpush1.msra.mxu0 0.0
    %74 = vmatprep.subr.mxu0 0.0
    %75 = vmatpush1.msra.mxu0 0.0
    %76 = vmatprep.subr.mxu0 0.0
    %77 = vmatpush1.msra.mxu0 0.0
    %78 = vmatprep.subr.mxu0 0.0
    %79 = vmatpush1.msra.mxu0 0.0
    %80 = vmatprep.subr.mxu0 0.0
    %81 = vmatpush1.msra.mxu0 0.0
    %82 = vmatprep.subr.mxu0 0.0
    %83 = vmatpush1.msra.mxu0 0.0
    %84 = vmatprep.subr.mxu0 0.0
    %85 = vmatpush1.msra.mxu0 0.0
    %86 = vmatprep.subr.mxu0 0.0
    %87 = vmatpush1.msra.mxu0 0.0
    %88 = vmatprep.subr.mxu0 0.0
    %89 = vmatpush1.msra.mxu0 0.0
    %90 = vmatprep.subr.mxu0 0.0
    %91 = vmatpush1.msra.mxu0 0.0
    %92 = vmatprep.subr.mxu0 0.0
    %93 = vmatpush1.msra.mxu0 0.0
    %94 = vmatprep.subr.mxu0 0.0
    %95 = vmatpush1.msra.mxu0 0.0
    %96 = vmatprep.subr.mxu0 0.0
    %97 = vmatpush1.msra.mxu0 0.0
    %98 = vmatprep.subr.mxu0 0.0
    %99 = vmatpush1.msra.mxu0 0.0
    %100 = vmatprep.subr.mxu0 0.0
    %101 = vmatpush1.msra.mxu0 0.0
    %102 = vmatprep.subr.mxu0 0.0
    %103 = vmatpush1.msra.mxu0 0.0
    %104 = vmatprep.subr.mxu0 0.0
    %105 = vmatpush1.msra.mxu0 0.0
    %106 = vmatprep.subr.mxu0 0.0
    %107 = vmatpush1.msra.mxu0 0.0
    %108 = vmatprep.subr.mxu0 0.0
    %109 = vmatpush1.msra.mxu0 0.0
    %110 = vmatprep.mubr.f32.mxu0 0.0
    %111 = vmatmul.mubr.f32.gmra.mrb[0].mxu0 %v40
    %v112 = vpop.f32.mrb[0].mxu0
    %v113 = vadd.f32 %v37, %v112
    %v114 = vpop.f32.mrb[0].mxu0
    %115 = vdwg.mxu0
    %v116 = vld [vmem:[%s5 + $0x10] sm:$0x3]
    %v117 = vld [vmem:[%s2] sm:$0xff]
    %vm118 = vcmask 15360
    %v120 = vsel %vm118, %v117, 0
    %vm122 = vcmask 1041408
    %v124 = vsel %vm122, %v116, 0
    %126 = vmatprep.subr.mxu0 0.0
    %127 = vmatpush1.msra.mxu0 %v124
    %128 = vmatprep.subr.mxu0 0.0
    %129 = vmatpush1.msra.mxu0 0.0
    %130 = vmatprep.subr.mxu0 0.0
    %131 = vmatpush1.msra.mxu0 0.0
    %132 = vmatprep.subr.mxu0 0.0
    %133 = vmatpush1.msra.mxu0 0.0
    %134 = vmatprep.subr.mxu0 0.0
    %135 = vmatpush1.msra.mxu0 0.0
    %136 = vmatprep.subr.mxu0 0.0
    %137 = vmatpush1.msra.mxu0 0.0
    %138 = vmatprep.subr.mxu0 0.0
    %139 = vmatpush1.msra.mxu0 0.0
    %140 = vmatprep.subr.mxu0 0.0
    %141 = vmatpush1.msra.mxu0 0.0
    %142 = vmatprep.subr.mxu0 0.0
    %143 = vmatpush1.msra.mxu0 0.0
    %144 = vmatprep.subr.mxu0 0.0
    %145 = vmatpush1.msra.mxu0 0.0
    %146 = vmatprep.subr.mxu0 0.0
    %147 = vmatpush1.msra.mxu0 0.0
    %148 = vmatprep.subr.mxu0 0.0
    %149 = vmatpush1.msra.mxu0 0.0
    %150 = vmatprep.subr.mxu0 0.0
    %151 = vmatpush1.msra.mxu0 0.0
    %152 = vmatprep.subr.mxu0 0.0
    %153 = vmatpush1.msra.mxu0 0.0
    %154 = vmatprep.subr.mxu0 0.0
    %155 = vmatpush1.msra.mxu0 0.0
    %156 = vmatprep.subr.mxu0 0.0
    %157 = vmatpush1.msra.mxu0 0.0
    %158 = vmatprep.subr.mxu0 0.0
    %159 = vmatpush1.msra.mxu0 0.0
    %160 = vmatprep.subr.mxu0 0.0
    %161 = vmatpush1.msra.mxu0 0.0
    %162 = vmatprep.subr.mxu0 0.0
    %163 = vmatpush1.msra.mxu0 0.0
    %164 = vmatprep.subr.mxu0 0.0
    %165 = vmatpush1.msra.mxu0 0.0
    %166 = vmatprep.subr.mxu0 0.0
    %167 = vmatpush1.msra.mxu0 0.0
    %168 = vmatprep.subr.mxu0 0.0
    %169 = vmatpush1.msra.mxu0 0.0
    %170 = vmatprep.subr.mxu0 0.0
    %171 = vmatpush1.msra.mxu0 0.0
    %172 = vmatprep.subr.mxu0 0.0
    %173 = vmatpush1.msra.mxu0 0.0
    %174 = vmatprep.subr.mxu0 0.0
    %175 = vmatpush1.msra.mxu0 0.0
    %176 = vmatprep.subr.mxu0 0.0
    %177 = vmatpush1.msra.mxu0 0.0
    %178 = vmatprep.subr.mxu0 0.0
    %179 = vmatpush1.msra.mxu0 0.0
    %180 = vmatprep.subr.mxu0 0.0
    %181 = vmatpush1.msra.mxu0 0.0
    %182 = vmatprep.subr.mxu0 0.0
    %183 = vmatpush1.msra.mxu0 0.0
    %184 = vmatprep.subr.mxu0 0.0
    %185 = vmatpush1.msra.mxu0 0.0
    %186 = vmatprep.subr.mxu0 0.0
    %187 = vmatpush1.msra.mxu0 0.0
    %188 = vmatprep.subr.mxu0 0.0
    %189 = vmatpush1.msra.mxu0 0.0
    %190 = vmatprep.mubr.f32.mxu0 0.0
    %191 = vmatmul.mubr.f32.gmra.mrb[0].mxu0 %v120
    %v192 = vpop.f32.mrb[0].mxu0
    %v193 = vadd.f32 0.0, %v192
    %v194 = vpop.f32.mrb[0].mxu0
    %195 = vdwg.mxu0
    %v196 = vadd.f32 %v113, %v193
    %v197 = vld [vmem:[%s5 + $0x18] sm:$0x3]
    %v198 = vld [vmem:[%s3] sm:$0xff]
    %v200 = vsel %vm118, %v198, 0
    %v203 = vsel %vm122, %v197, 0
    %205 = vmatprep.subr.mxu0 0.0
    %206 = vmatpush1.msra.mxu0 %v203
    %207 = vmatprep.subr.mxu0 0.0
    %208 = vmatpush1.msra.mxu0 0.0
    %209 = vmatprep.subr.mxu0 0.0
    %210 = vmatpush1.msra.mxu0 0.0
    %211 = vmatprep.subr.mxu0 0.0
    %212 = vmatpush1.msra.mxu0 0.0
    %213 = vmatprep.subr.mxu0 0.0
    %214 = vmatpush1.msra.mxu0 0.0
    %215 = vmatprep.subr.mxu0 0.0
    %216 = vmatpush1.msra.mxu0 0.0
    %217 = vmatprep.subr.mxu0 0.0
    %218 = vmatpush1.msra.mxu0 0.0
    %219 = vmatprep.subr.mxu0 0.0
    %220 = vmatpush1.msra.mxu0 0.0
    %221 = vmatprep.subr.mxu0 0.0
    %222 = vmatpush1.msra.mxu0 0.0
    %223 = vmatprep.subr.mxu0 0.0
    %224 = vmatpush1.msra.mxu0 0.0
    %225 = vmatprep.subr.mxu0 0.0
    %226 = vmatpush1.msra.mxu0 0.0
    %227 = vmatprep.subr.mxu0 0.0
    %228 = vmatpush1.msra.mxu0 0.0
    %229 = vmatprep.subr.mxu0 0.0
    %230 = vmatpush1.msra.mxu0 0.0
    %231 = vmatprep.subr.mxu0 0.0
    %232 = vmatpush1.msra.mxu0 0.0
    %233 = vmatprep.subr.mxu0 0.0
    %234 = vmatpush1.msra.mxu0 0.0
    %235 = vmatprep.subr.mxu0 0.0
    %236 = vmatpush1.msra.mxu0 0.0
    %237 = vmatprep.subr.mxu0 0.0
    %238 = vmatpush1.msra.mxu0 0.0
    %239 = vmatprep.subr.mxu0 0.0
    %240 = vmatpush1.msra.mxu0 0.0
    %241 = vmatprep.subr.mxu0 0.0
    %242 = vmatpush1.msra.mxu0 0.0
    %243 = vmatprep.subr.mxu0 0.0
    %244 = vmatpush1.msra.mxu0 0.0
    %245 = vmatprep.subr.mxu0 0.0
    %246 = vmatpush1.msra.mxu0 0.0
    %247 = vmatprep.subr.mxu0 0.0
    %248 = vmatpush1.msra.mxu0 0.0
    %249 = vmatprep.subr.mxu0 0.0
    %250 = vmatpush1.msra.mxu0 0.0
    %251 = vmatprep.subr.mxu0 0.0
    %252 = vmatpush1.msra.mxu0 0.0
    %253 = vmatprep.subr.mxu0 0.0
    %254 = vmatpush1.msra.mxu0 0.0
    %255 = vmatprep.subr.mxu0 0.0
    %256 = vmatpush1.msra.mxu0 0.0
    %257 = vmatprep.subr.mxu0 0.0
    %258 = vmatpush1.msra.mxu0 0.0
    %259 = vmatprep.subr.mxu0 0.0
    %260 = vmatpush1.msra.mxu0 0.0
    %261 = vmatprep.subr.mxu0 0.0
    %262 = vmatpush1.msra.mxu0 0.0
    %263 = vmatprep.subr.mxu0 0.0
    %264 = vmatpush1.msra.mxu0 0.0
    %265 = vmatprep.subr.mxu0 0.0
    %266 = vmatpush1.msra.mxu0 0.0
    %267 = vmatprep.subr.mxu0 0.0
    %268 = vmatpush1.msra.mxu0 0.0
    %269 = vmatprep.mubr.f32.mxu0 0.0
    %270 = vmatmul.mubr.f32.gmra.mrb[0].mxu0 %v200
    %v271 = vpop.f32.mrb[0].mxu0
    %v272 = vadd.f32 0.0, %v271
    %v273 = vpop.f32.mrb[0].mxu0
    %274 = vdwg.mxu0
    %v275 = vadd.f32 %v196, %v272
    %v276 = vld [vmem:[%s5 + $0x20] sm:$0x7]
    %v277 = vld [vmem:[%s4] sm:$0xff]
    %vm278 = vcmask 23552
    %v280 = vsel %vm278, %v277, 0
    %vm282 = vcmask 1042432
    %v284 = vsel %vm282, %v276, 0
    %286 = vmatprep.subr.mxu0 0.0
    %287 = vmatpush1.msra.mxu0 %v284
    %288 = vmatprep.subr.mxu0 0.0
    %289 = vmatpush1.msra.mxu0 0.0
    %290 = vmatprep.subr.mxu0 0.0
    %291 = vmatpush1.msra.mxu0 0.0
    %292 = vmatprep.subr.mxu0 0.0
    %293 = vmatpush1.msra.mxu0 0.0
    %294 = vmatprep.subr.mxu0 0.0
    %295 = vmatpush1.msra.mxu0 0.0
    %296 = vmatprep.subr.mxu0 0.0
    %297 = vmatpush1.msra.mxu0 0.0
    %298 = vmatprep.subr.mxu0 0.0
    %299 = vmatpush1.msra.mxu0 0.0
    %300 = vmatprep.subr.mxu0 0.0
    %301 = vmatpush1.msra.mxu0 0.0
    %302 = vmatprep.subr.mxu0 0.0
    %303 = vmatpush1.msra.mxu0 0.0
    %304 = vmatprep.subr.mxu0 0.0
    %305 = vmatpush1.msra.mxu0 0.0
    %306 = vmatprep.subr.mxu0 0.0
    %307 = vmatpush1.msra.mxu0 0.0
    %308 = vmatprep.subr.mxu0 0.0
    %309 = vmatpush1.msra.mxu0 0.0
    %310 = vmatprep.subr.mxu0 0.0
    %311 = vmatpush1.msra.mxu0 0.0
    %312 = vmatprep.subr.mxu0 0.0
    %313 = vmatpush1.msra.mxu0 0.0
    %314 = vmatprep.subr.mxu0 0.0
    %315 = vmatpush1.msra.mxu0 0.0
    %316 = vmatprep.subr.mxu0 0.0
    %317 = vmatpush1.msra.mxu0 0.0
    %318 = vmatprep.subr.mxu0 0.0
    %319 = vmatpush1.msra.mxu0 0.0
    %320 = vmatprep.subr.mxu0 0.0
    %321 = vmatpush1.msra.mxu0 0.0
    %322 = vmatprep.subr.mxu0 0.0
    %323 = vmatpush1.msra.mxu0 0.0
    %324 = vmatprep.subr.mxu0 0.0
    %325 = vmatpush1.msra.mxu0 0.0
    %326 = vmatprep.subr.mxu0 0.0
    %327 = vmatpush1.msra.mxu0 0.0
    %328 = vmatprep.subr.mxu0 0.0
    %329 = vmatpush1.msra.mxu0 0.0
    %330 = vmatprep.subr.mxu0 0.0
    %331 = vmatpush1.msra.mxu0 0.0
    %332 = vmatprep.subr.mxu0 0.0
    %333 = vmatpush1.msra.mxu0 0.0
    %334 = vmatprep.subr.mxu0 0.0
    %335 = vmatpush1.msra.mxu0 0.0
    %336 = vmatprep.subr.mxu0 0.0
    %337 = vmatpush1.msra.mxu0 0.0
    %338 = vmatprep.subr.mxu0 0.0
    %339 = vmatpush1.msra.mxu0 0.0
    %340 = vmatprep.subr.mxu0 0.0
    %341 = vmatpush1.msra.mxu0 0.0
    %342 = vmatprep.subr.mxu0 0.0
    %343 = vmatpush1.msra.mxu0 0.0
    %344 = vmatprep.subr.mxu0 0.0
    %345 = vmatpush1.msra.mxu0 0.0
    %346 = vmatprep.subr.mxu0 0.0
    %347 = vmatpush1.msra.mxu0 0.0
    %348 = vmatprep.subr.mxu0 0.0
    %349 = vmatpush1.msra.mxu0 0.0
    %350 = vmatprep.mubr.f32.mxu0 0.0
    %351 = vmatmul.mubr.f32.gmra.mrb[0].mxu0 %v280
    %v352 = vpop.f32.mrb[0].mxu0
    %v353 = vadd.f32 0.0, %v352
    %v354 = vpop.f32.mrb[0].mxu0
    %355 = vdwg.mxu0
    %v356 = vadd.f32 %v275, %v353
    %v357 = vld [vmem:[%s5 + $0x58] sm:$0xf]
    %v358 = vlaneseq
    %v359 = vshrl.u32 %v358, 7
    %v360 = vsub.s32 0, %v359
    %v361 = vrot.slane %v357, %v360
    %v362 = vadd.f32 %v356, %v361
    %v363 = vmax.f32 %v362, 0.0
    %v364 = vld [vmem:[%s5 + $0x28] sm:$0xff]
    %v365 = vld [vmem:[%s5 + $0x30] sm:$0xff]
    %v366 = vld [vmem:[%s5 + $0x38] sm:$0xff]
    %v367 = vlaneseq
    %v368 = vshrl.u32 %v367, 7
    %v369 = vsub.s32 1, %v368
    %v370 = vrot.slane %v357, %v369
    %vm371 = vcmask 195584
    %v373 = vsel %vm371, %v363, 0
    %375 = vmatprep.subr.mxu0 0.0
    %376 = vmatpush1.msra.mxu0 %v364
    %377 = vmatprep.subr.mxu0 0.0
    %378 = vmatpush1.msra.mxu0 %v365
    %379 = vmatprep.subr.mxu0 0.0
    %380 = vmatpush1.msra.mxu0 %v366
    %381 = vmatprep.subr.mxu0 0.0
    %382 = vmatpush1.msra.mxu0 0.0
    %383 = vmatprep.subr.mxu0 0.0
    %384 = vmatpush1.msra.mxu0 0.0
    %385 = vmatprep.subr.mxu0 0.0
    %386 = vmatpush1.msra.mxu0 0.0
    %387 = vmatprep.subr.mxu0 0.0
    %388 = vmatpush1.msra.mxu0 0.0
    %389 = vmatprep.subr.mxu0 0.0
    %390 = vmatpush1.msra.mxu0 0.0
    %391 = vmatprep.subr.mxu0 0.0
    %392 = vmatpush1.msra.mxu0 0.0
    %393 = vmatprep.subr.mxu0 0.0
    %394 = vmatpush1.msra.mxu0 0.0
    %395 = vmatprep.subr.mxu0 0.0
    %396 = vmatpush1.msra.mxu0 0.0
    %397 = vmatprep.subr.mxu0 0.0
    %398 = vmatpush1.msra.mxu0 0.0
    %399 = vmatprep.subr.mxu0 0.0
    %400 = vmatpush1.msra.mxu0 0.0
    %401 = vmatprep.subr.mxu0 0.0
    %402 = vmatpush1.msra.mxu0 0.0
    %403 = vmatprep.subr.mxu0 0.0
    %404 = vmatpush1.msra.mxu0 0.0
    %405 = vmatprep.subr.mxu0 0.0
    %406 = vmatpush1.msra.mxu0 0.0
    %407 = vmatprep.subr.mxu0 0.0
    %408 = vmatpush1.msra.mxu0 0.0
    %409 = vmatprep.subr.mxu0 0.0
    %410 = vmatpush1.msra.mxu0 0.0
    %411 = vmatprep.subr.mxu0 0.0
    %412 = vmatpush1.msra.mxu0 0.0
    %413 = vmatprep.subr.mxu0 0.0
    %414 = vmatpush1.msra.mxu0 0.0
    %415 = vmatprep.subr.mxu0 0.0
    %416 = vmatpush1.msra.mxu0 0.0
    %417 = vmatprep.subr.mxu0 0.0
    %418 = vmatpush1.msra.mxu0 0.0
    %419 = vmatprep.subr.mxu0 0.0
    %420 = vmatpush1.msra.mxu0 0.0
    %421 = vmatprep.subr.mxu0 0.0
    %422 = vmatpush1.msra.mxu0 0.0
    %423 = vmatprep.subr.mxu0 0.0
    %424 = vmatpush1.msra.mxu0 0.0
    %425 = vmatprep.subr.mxu0 0.0
    %426 = vmatpush1.msra.mxu0 0.0
    %427 = vmatprep.subr.mxu0 0.0
    %428 = vmatpush1.msra.mxu0 0.0
    %429 = vmatprep.subr.mxu0 0.0
    %430 = vmatpush1.msra.mxu0 0.0
    %431 = vmatprep.subr.mxu0 0.0
    %432 = vmatpush1.msra.mxu0 0.0
    %433 = vmatprep.subr.mxu0 0.0
    %434 = vmatpush1.msra.mxu0 0.0
    %435 = vmatprep.subr.mxu0 0.0
    %436 = vmatpush1.msra.mxu0 0.0
    %437 = vmatprep.subr.mxu0 0.0
    %438 = vmatpush1.msra.mxu0 0.0
    %439 = vmatprep.mubr.f32.mxu0 0.0
    %440 = vmatmul.mubr.f32.gmra.mrb[0].mxu0 %v373
    %v441 = vpop.f32.mrb[0].mxu0
    %v442 = vadd.f32 %v370, %v441
    %v443 = vpop.f32.mrb[0].mxu0
    %444 = vdwg.mxu0
    %v445 = vmul.f32 %v442, %v442
    %v446 = vld [vmem:[%s5 + $0x40] sm:$0xff]
    %v447 = vld [vmem:[%s5 + $0x48] sm:$0xff]
    %v448 = vld [vmem:[%s5 + $0x50] sm:$0xff]
    %v450 = vsel %vm371, %v445, 0
    %452 = vmatprep.subr.mxu0 0.0
    %453 = vmatpush1.msra.mxu0 %v446
    %454 = vmatprep.subr.mxu0 0.0
    %455 = vmatpush1.msra.mxu0 %v447
    %456 = vmatprep.subr.mxu0 0.0
    %457 = vmatpush1.msra.mxu0 %v448
    %458 = vmatprep.subr.mxu0 0.0
    %459 = vmatpush1.msra.mxu0 0.0
    %460 = vmatprep.subr.mxu0 0.0
    %461 = vmatpush1.msra.mxu0 0.0
    %462 = vmatprep.subr.mxu0 0.0
    %463 = vmatpush1.msra.mxu0 0.0
    %464 = vmatprep.subr.mxu0 0.0
    %465 = vmatpush1.msra.mxu0 0.0
    %466 = vmatprep.subr.mxu0 0.0
    %467 = vmatpush1.msra.mxu0 0.0
    %468 = vmatprep.subr.mxu0 0.0
    %469 = vmatpush1.msra.mxu0 0.0
    %470 = vmatprep.subr.mxu0 0.0
    %471 = vmatpush1.msra.mxu0 0.0
    %472 = vmatprep.subr.mxu0 0.0
    %473 = vmatpush1.msra.mxu0 0.0
    %474 = vmatprep.subr.mxu0 0.0
    %475 = vmatpush1.msra.mxu0 0.0
    %476 = vmatprep.subr.mxu0 0.0
    %477 = vmatpush1.msra.mxu0 0.0
    %478 = vmatprep.subr.mxu0 0.0
    %479 = vmatpush1.msra.mxu0 0.0
    %480 = vmatprep.subr.mxu0 0.0
    %481 = vmatpush1.msra.mxu0 0.0
    %482 = vmatprep.subr.mxu0 0.0
    %483 = vmatpush1.msra.mxu0 0.0
    %484 = vmatprep.subr.mxu0 0.0
    %485 = vmatpush1.msra.mxu0 0.0
    %486 = vmatprep.subr.mxu0 0.0
    %487 = vmatpush1.msra.mxu0 0.0
    %488 = vmatprep.subr.mxu0 0.0
    %489 = vmatpush1.msra.mxu0 0.0
    %490 = vmatprep.subr.mxu0 0.0
    %491 = vmatpush1.msra.mxu0 0.0
    %492 = vmatprep.subr.mxu0 0.0
    %493 = vmatpush1.msra.mxu0 0.0
    %494 = vmatprep.subr.mxu0 0.0
    %495 = vmatpush1.msra.mxu0 0.0
    %496 = vmatprep.subr.mxu0 0.0
    %497 = vmatpush1.msra.mxu0 0.0
    %498 = vmatprep.subr.mxu0 0.0
    %499 = vmatpush1.msra.mxu0 0.0
    %500 = vmatprep.subr.mxu0 0.0
    %501 = vmatpush1.msra.mxu0 0.0
    %502 = vmatprep.subr.mxu0 0.0
    %503 = vmatpush1.msra.mxu0 0.0
    %504 = vmatprep.subr.mxu0 0.0
    %505 = vmatpush1.msra.mxu0 0.0
    %506 = vmatprep.subr.mxu0 0.0
    %507 = vmatpush1.msra.mxu0 0.0
    %508 = vmatprep.subr.mxu0 0.0
    %509 = vmatpush1.msra.mxu0 0.0
    %510 = vmatprep.subr.mxu0 0.0
    %511 = vmatpush1.msra.mxu0 0.0
    %512 = vmatprep.subr.mxu0 0.0
    %513 = vmatpush1.msra.mxu0 0.0
    %514 = vmatprep.subr.mxu0 0.0
    %515 = vmatpush1.msra.mxu0 0.0
    %516 = vmatprep.mubr.f32.mxu0 0.0
    %517 = vmatmul.mubr.f32.gmra.mrb[0].mxu0 %v450
    %v518 = vpop.f32.mrb[0].mxu0
    %v519 = vadd.f32 1e-05, %v518
    %v520 = vpop.f32.mrb[0].mxu0
    %521 = vdwg.mxu0
    %v522 = vrsqrt.pop %v519
    %v523 = vmul.f32 %v442, %v522
    %v524 = vlaneseq
    %v525 = vshrl.u32 %v524, 7
    %v526 = vsub.s32 2, %v525
    %v527 = vrot.slane %v357, %v526
    %v528 = vmul.f32 %v523, %v527
    %v529 = vlaneseq
    %v530 = vshrl.u32 %v529, 7
    %v531 = vsub.s32 3, %v530
    %v532 = vrot.slane %v357, %v531
    %v533 = vadd.f32 %v528, %v532
    %534 = vst.msk [vmem:[#allocation2] sm:$0xff] %vm371, %v533
    // Predicated region
    $region26: #{finger_turn_hard_forward.1} parent=1 // pred_check
      _
    $region27: #{finger_turn_hard_forward.1} parent=1 // pred_check_branch
      %536 = sbr.rel (0) target = $region29
    $region28: #{finger_turn_hard_forward.1} parent=1 // pred_region
      %s538 = ssub.s32 128, 128
      %539 = vsyncadd [#allocation3], %s538
      %s541 = sshll.u32 [#allocation2], 4
      %s542 = int_to_ptr.vmem [resolvable:$true] %s541
      %544 = dma.vmem_to_hbm [thread:$0]  %s542, 128, %s6, [#allocation3]
    $region29: #{finger_turn_hard_forward.1} parent=1 // pred_fallthru
      _
    // Predicated region
    $region30: #{finger_turn_hard_forward.1} parent=1 // pred_check
      _
    $region31: #{finger_turn_hard_forward.1} parent=1 // pred_check_branch
      %546 = sbr.rel (0) target = $region33
    $region32: #{finger_turn_hard_forward.1} parent=1 // pred_region
      %547 = dma.done [#allocation3], 128
    $region33: #{finger_turn_hard_forward.1} parent=1 // pred_fallthru
      _
    %548 = vsyncpa [#allocation3], 1

</llo_original>
